<compile_context>
chip_gen: v6e
topology: v6e:2x2x1
jax: 0.10.0
libtpu: 0.0.40
codegen_flags: <defaults>
</compile_context>

<pallas_src>
import functools

import jax
import jax.numpy as jnp
from jax.experimental import pallas as pl
from jax.experimental.pallas import tpu as pltpu

_LANES = 128


def _round_up(x, m):
    return ((x + m - 1) // m) * m


def _vmem_capacity_bytes():
    try:
        info = pltpu.get_tpu_info()
        cap = getattr(info, "vmem_capacity_bytes", None)
        if cap:
            return int(cap)
    except Exception:
        pass
    return 64 * 1024 * 1024        # conservative default (v7x per-TC VMEM)


# ---------------------------------------------------------------------------
# Fused path: linear + all K hops in a single kernel (adjacency VMEM-resident).
# ---------------------------------------------------------------------------
def _fused_sgc_kernel(x_ref, wt_ref, b_ref, adj_ref, norm_ref, o_ref, *,
                      num_hops):
    # Linear: [N, F] bf16 @ [F, Hp] bf16 -> f32 acc, + bias (f32).
    feat = jnp.dot(x_ref[...], wt_ref[...],
                   preferred_element_type=jnp.float32) + b_ref[...]
    norm = norm_ref[...]                  # [N, 1] f32
    adj_t = adj_ref[...]                  # [N, N] bf16, 0/1, adj_t[v, u] = A[u, v]
    for _ in range(num_hops):
        pre = (feat * norm).astype(jnp.bfloat16)            # source norm (VPU)
        agg = jnp.dot(adj_t, pre, preferred_element_type=jnp.float32)  # MXU
        feat = agg * norm                                     # dest norm (VPU)
    o_ref[...] = feat.astype(o_ref.dtype)


# ---------------------------------------------------------------------------
# Streaming fallback kernels (large N): row-tiled over destination nodes.
# ---------------------------------------------------------------------------
def _linear_kernel(x_ref, wt_ref, b_ref, o_ref):
    acc = jnp.dot(x_ref[...], wt_ref[...], preferred_element_type=jnp.float32)
    o_ref[...] = (acc + b_ref[...]).astype(o_ref.dtype)


def _hop_kernel(adj_ref, feat_ref, norm_ref, o_ref):
    # adj_ref : [tm, N]  bf16 0/1 row slab of A^T (rows = destination nodes)
    # feat_ref: [N, Hp]  bf16, already scaled by the source norm (resident)
    # norm_ref: [tm, 1]  f32 destination-side norm for these rows
    agg = jnp.dot(adj_ref[...], feat_ref[...],
                  preferred_element_type=jnp.float32)
    o_ref[...] = (agg * norm_ref[...]).astype(o_ref.dtype)


def sgc_forward(x, weight, bias, adj, *, num_hops):
    """x: [N, in_feats], weight: [H, in_feats], bias: [H],
    adj: [N, N] with adj[u, v] = 1 iff edge u -> v.  Returns [N, H] float32."""
    N, in_feats = x.shape
    H = weight.shape[0]
    Hp = _round_up(H, _LANES)          # lane-dense feature width

    # ---- minimal wrapper prep (two passes over adj total):
    # in-degree(v) = sum_u adj[u, v]; clamp(min=1); norm = deg^-1/2 (f32).
    degs = jnp.maximum(jnp.sum(adj.astype(jnp.float32), axis=0), 1.0)
    norm = jax.lax.rsqrt(degs).reshape(N, 1)                 # [N, 1] f32
    # Transposed 0/1 adjacency in bf16 (exact) -- one fused transpose+cast.
    adj_t = adj.T.astype(jnp.bfloat16)                       # [N, N]

    # Lane-pad the linear layer to Hp; padding columns are exactly zero and
    # stay zero through propagation (sliced off at the end).
    x_bf = x.astype(jnp.bfloat16)
    wt = jnp.zeros((in_feats, Hp), jnp.bfloat16).at[:, :H].set(
        weight.T.astype(jnp.bfloat16))
    b = jnp.zeros((1, Hp), jnp.float32).at[:, :H].set(
        bias.astype(jnp.float32).reshape(1, H))

    cap = _vmem_capacity_bytes()
    budget = int(0.7 * cap)

    # ---- fused path: one kernel, adjacency read from HBM exactly once.
    fused_bytes = (4 * N * N                    # adj_t bf16 (buffer + value copy)
                   + 2 * N * in_feats           # x bf16
                   + 2 * in_feats * Hp + 4 * Hp + 4 * N
                   + 4 * N * Hp                 # f32 output
                   + 12 * N * Hp)               # in-kernel feat temporaries
    if fused_bytes <= budget:
        vmem_limit = int(min(int(0.85 * cap),
                             max(2 * fused_bytes, 32 * 1024 * 1024)))
        feat = pl.pallas_call(
            functools.partial(_fused_sgc_kernel, num_hops=num_hops),
            out_shape=jax.ShapeDtypeStruct((N, Hp), jnp.float32),
            compiler_params=pltpu.CompilerParams(vmem_limit_bytes=vmem_limit),
        )(x_bf, wt, b, adj_t, norm)
        return feat[:, :H]

    # ---- streaming fallback: row-tiled adjacency, one pallas_call per hop.
    tm = 128
    for cand in (1024, 512, 256, 128):
        need = 2 * cand * N * 2 + 2 * N * Hp * 2 + 2 * cand * Hp * 4 + 8 * cand
        if cand <= N and need <= budget:
            tm = cand
            break
    grid = (pl.cdiv(N, tm),)
    stream_params = pltpu.CompilerParams(
        dimension_semantics=("parallel",), vmem_limit_bytes=budget)

    feat = pl.pallas_call(
        _linear_kernel,
        out_shape=jax.ShapeDtypeStruct(
            (N, Hp), jnp.bfloat16 if num_hops else jnp.float32),
        grid=grid,
        in_specs=[
            pl.BlockSpec((tm, in_feats), lambda i: (i, 0)),
            pl.BlockSpec((in_feats, Hp), lambda i: (0, 0)),
            pl.BlockSpec((1, Hp), lambda i: (0, 0)),
        ],
        out_specs=pl.BlockSpec((tm, Hp), lambda i: (i, 0)),
        compiler_params=stream_params,
    )(x_bf, wt, b)

    for hop in range(num_hops):
        last = hop == num_hops - 1
        # Source-side norm applied once per hop (cheap N x Hp pass), bf16 for MXU.
        pre = (feat.astype(jnp.float32) * norm).astype(jnp.bfloat16)
        feat = pl.pallas_call(
            _hop_kernel,
            out_shape=jax.ShapeDtypeStruct(
                (N, Hp), jnp.float32 if last else jnp.bfloat16),
            grid=grid,
            in_specs=[
                pl.BlockSpec((tm, N), lambda i: (i, 0)),   # adj_t row slab (streamed)
                pl.BlockSpec((N, Hp), lambda i: (0, 0)),   # pre-scaled feat (resident)
                pl.BlockSpec((tm, 1), lambda i: (i, 0)),   # dest norm rows
            ],
            out_specs=pl.BlockSpec((tm, Hp), lambda i: (i, 0)),
            compiler_params=stream_params,
        )(adj_t, pre, norm)

    return feat[:, :H]


def sgc_reference(x, weight, bias, adj, *, num_hops):
    """Pure-JAX f32 reference mirroring the PyTorch/DGL forward."""
    adj_t = adj.T.astype(jnp.float32)
    degs = jnp.clip(jnp.sum(adj_t, axis=1, keepdims=True), 1.0, None)
    norm = jnp.power(degs, -0.5)
    feat = x.astype(jnp.float32) @ weight.T.astype(jnp.float32) + bias
    for _ in range(num_hops):
        feat = feat * norm
        feat = adj_t @ feat
        feat = feat * norm
    return feat


if __name__ == "__main__":
    # Small, SGC-appropriate sizes: N nodes, in_feats -> hidden, K hops.
    N = 128
    in_feats = 32
    hidden_lst = [32, 32]          # -> Linear(in_feats, 32), K = 2 hops
    num_hops = len(hidden_lst)
    H = hidden_lst[-1]

    key = jax.random.PRNGKey(0)
    kx, ka, kw, kb = jax.random.split(key, 4)

    x = jax.random.normal(kx, (N, in_feats), dtype=jnp.float32)

    # Random directed graph (dense adjacency).
    adj = (jax.random.uniform(ka, (N, N)) < 0.05).astype(jnp.float32)

    # PyTorch-Linear-style init: U(-1/sqrt(fan_in), 1/sqrt(fan_in)).
    bound = 1.0 / (in_feats ** 0.5)
    weight = jax.random.uniform(kw, (H, in_feats), minval=-bound, maxval=bound,
                                dtype=jnp.float32)
    bias = jax.random.uniform(kb, (H,), minval=-bound, maxval=bound,
                              dtype=jnp.float32)

    out = sgc_forward(x, weight, bias, adj, num_hops=num_hops)
    out = jax.block_until_ready(out)

    ref = sgc_reference(x, weight, bias, adj, num_hops=num_hops)
    assert out.shape == (N, H)
    # bf16 feature / weight operands with f32 accumulation and exact 0/1 bf16
    # adjacency, f32 norm: ~0.5% relative error per matmul, well within 2e-2.
    assert jnp.allclose(out, ref, atol=2e-2, rtol=2e-2), "mismatch vs reference"

    print("KERNEL_OK")
</pallas_src>

<mosaic_0001>
module attributes {stable_mosaic.version = 11 : i64} {
  func.func @_fused_sgc_kernel(%arg0: memref<128x32xbf16, #tpu.memory_space<vmem>>, %arg1: memref<32x128xbf16, #tpu.memory_space<vmem>>, %arg2: memref<1x128xf32, #tpu.memory_space<vmem>>, %arg3: memref<128x128xbf16, #tpu.memory_space<vmem>>, %arg4: memref<128x1xf32, #tpu.memory_space<vmem>>, %arg5: memref<128x128xf32, #tpu.memory_space<vmem>>) attributes {dimension_semantics = [], scalar_prefetch = 0 : i64, scratch_operands = 0 : i64, tpu.core_type = #tpu.core_type<tc>} {
    %c0 = arith.constant 0 : index
    %c0_0 = arith.constant 0 : index
    %0 = vector.load %arg0[%c0, %c0_0] : memref<128x32xbf16, #tpu.memory_space<vmem>>, vector<128x32xbf16>
    %c0_1 = arith.constant 0 : index
    %c0_2 = arith.constant 0 : index
    %1 = vector.load %arg1[%c0_1, %c0_2] : memref<32x128xbf16, #tpu.memory_space<vmem>>, vector<32x128xbf16>
    %cst = arith.constant dense<0.000000e+00> : vector<128x128xf32>
    %2 = tpu.matmul %0, %1, %cst {dimension_numbers = #tpu.dot_dimension_numbers<[1], [0], [0], [1], [0, 0, 1, 1], [], []>} : vector<128x32xbf16>, vector<32x128xbf16>, vector<128x128xf32> -> vector<128x128xf32>
    %c0_3 = arith.constant 0 : index
    %c0_4 = arith.constant 0 : index
    %3 = vector.load %arg2[%c0_3, %c0_4] : memref<1x128xf32, #tpu.memory_space<vmem>>, vector<1x128xf32>
    %4 = vector.broadcast %3 : vector<1x128xf32> to vector<128x128xf32>
    %5 = arith.addf %2, %4 : vector<128x128xf32>
    %c0_5 = arith.constant 0 : index
    %c0_6 = arith.constant 0 : index
    %6 = vector.load %arg4[%c0_5, %c0_6] : memref<128x1xf32, #tpu.memory_space<vmem>>, vector<128x1xf32>
    %c0_7 = arith.constant 0 : index
    %c0_8 = arith.constant 0 : index
    %7 = vector.load %arg3[%c0_7, %c0_8] : memref<128x128xbf16, #tpu.memory_space<vmem>>, vector<128x128xbf16>
    %8 = vector.broadcast %6 : vector<128x1xf32> to vector<128x128xf32>
    %9 = arith.mulf %5, %8 : vector<128x128xf32>
    %10 = arith.truncf %9 : vector<128x128xf32> to vector<128x128xbf16>
    %cst_9 = arith.constant dense<0.000000e+00> : vector<128x128xf32>
    %11 = tpu.matmul %7, %10, %cst_9 {dimension_numbers = #tpu.dot_dimension_numbers<[1], [0], [0], [1], [0, 0, 1, 1], [], []>} : vector<128x128xbf16>, vector<128x128xbf16>, vector<128x128xf32> -> vector<128x128xf32>
    %12 = vector.broadcast %6 : vector<128x1xf32> to vector<128x128xf32>
    %13 = arith.mulf %11, %12 : vector<128x128xf32>
    %14 = vector.broadcast %6 : vector<128x1xf32> to vector<128x128xf32>
    %15 = arith.mulf %13, %14 : vector<128x128xf32>
    %16 = arith.truncf %15 : vector<128x128xf32> to vector<128x128xbf16>
    %cst_10 = arith.constant dense<0.000000e+00> : vector<128x128xf32>
    %17 = tpu.matmul %7, %16, %cst_10 {dimension_numbers = #tpu.dot_dimension_numbers<[1], [0], [0], [1], [0, 0, 1, 1], [], []>} : vector<128x128xbf16>, vector<128x128xbf16>, vector<128x128xf32> -> vector<128x128xf32>
    %18 = vector.broadcast %6 : vector<128x1xf32> to vector<128x128xf32>
    %19 = arith.mulf %17, %18 : vector<128x128xf32>
    %c0_11 = arith.constant 0 : index
    %c0_12 = arith.constant 0 : index
    %20 = vector.load %arg5[%c0_11, %c0_12] : memref<128x128xf32, #tpu.memory_space<vmem>>, vector<128x128xf32>
    tpu.vector_store %arg5[%c0_11, %c0_12], %19 {strides = array<i32>} : memref<128x128xf32, #tpu.memory_space<vmem>>, vector<128x128xf32>,
    return
  }
}

</mosaic_0001>

<llo_original>
// kernel: tpu_custom_call.1
$region0: #{tpu_custom_call.1}
  #allocation0 [shape = 'u32[]', space=smem, size = 0x4, offset = 0x4, fixed_abs, tag = 'smem constant byte address 0x4 - core index']
  #allocation1 [shape = 'u32[144,128]{1,0:T(1,128)}', space=vmem, size = 0x12000, scoped, tag = 'internal scratch']
  %s0 = inlined_call_operand.vmem [shape: bf16[128,32], index: 0, kind: input, shape index: {}]
  %s1 = inlined_call_operand.vmem [shape: bf16[32,128], index: 1, kind: input, shape index: {}]
  %s2 = inlined_call_operand.vmem [shape: f32[1,128], index: 2, kind: input, shape index: {}]
  %s3 = inlined_call_operand.vmem [shape: bf16[128,128], index: 3, kind: input, shape index: {}]
  %s4 = inlined_call_operand.vmem [shape: f32[128,1], index: 4, kind: input, shape index: {}]
  %s5 = inlined_call_operand.hbm [shape: f32[128,128], index: 5, kind: output, shape index: {}]
  %s6 = sld [smem:[#allocation0]]
  $region30: #{tpu_custom_call.1} parent=0
    _
  %s8 = ssub.s32 1, %s6
  %s9 = scalar_select 0, %s8, %s6
  $region1: #{tpu_custom_call.1} parent=0
    #allocation2 [shape = 'u8[65536]{0}', space=vmem, size = 0x10000, scoped, tag = 'output window, operand 0, single buffered']
    #allocation3 [shape = 's32[1]{0}', space=sflag, size = 0x4, scoped, tag = 'scoped memory for tpu_custom_call.1']
    %10 = vsyncpa [#allocation3], 0
    // Predicated region
    $region2: #{tpu_custom_call.1} parent=1 // pred_check
      _
    $region3: #{tpu_custom_call.1} parent=1 // pred_check_branch
      %12 = sbr.rel (0) target = $region5
    $region4: #{tpu_custom_call.1} parent=1 // pred_region
      _
    $region5: #{tpu_custom_call.1} parent=1 // pred_fallthru
      _
    // Predicated region
    $region6: #{tpu_custom_call.1} parent=1 // pred_check
      _
    $region7: #{tpu_custom_call.1} parent=1 // pred_check_branch
      %14 = sbr.rel (0) target = $region9
    $region8: #{tpu_custom_call.1} parent=1 // pred_region
      _
    $region9: #{tpu_custom_call.1} parent=1 // pred_fallthru
      _
    // Predicated region
    $region10: #{tpu_custom_call.1} parent=1 // pred_check
      _
    $region11: #{tpu_custom_call.1} parent=1 // pred_check_branch
      %16 = sbr.rel (0) target = $region13
    $region12: #{tpu_custom_call.1} parent=1 // pred_region
      _
    $region13: #{tpu_custom_call.1} parent=1 // pred_fallthru
      _
    // Predicated region
    $region14: #{tpu_custom_call.1} parent=1 // pred_check
      _
    $region15: #{tpu_custom_call.1} parent=1 // pred_check_branch
      %18 = sbr.rel (0) target = $region17
    $region16: #{tpu_custom_call.1} parent=1 // pred_region
      _
    $region17: #{tpu_custom_call.1} parent=1 // pred_fallthru
      _
    // Predicated region
    $region18: #{tpu_custom_call.1} parent=1 // pred_check
      _
    $region19: #{tpu_custom_call.1} parent=1 // pred_check_branch
      %20 = sbr.rel (0) target = $region21
    $region20: #{tpu_custom_call.1} parent=1 // pred_region
      _
    $region21: #{tpu_custom_call.1} parent=1 // pred_fallthru
      _
    %v22 = vld [vmem:[%s0] sm:$0xf]
    %v23 = vld [vmem:[%s0 + $0x4] sm:$0xf]
    %v24 = vld [vmem:[%s0 + $0x8] sm:$0xf]
    %v25 = vld [vmem:[%s0 + $0xc] sm:$0xf]
    %v26 = vld [vmem:[%s0 + $0x10] sm:$0xf]
    %v27 = vld [vmem:[%s0 + $0x14] sm:$0xf]
    %v28 = vld [vmem:[%s0 + $0x18] sm:$0xf]
    %v29 = vld [vmem:[%s0 + $0x1c] sm:$0xf]
    %v30 = vld [vmem:[%s0 + $0x20] sm:$0xf]
    %v31 = vld [vmem:[%s0 + $0x24] sm:$0xf]
    %v32 = vld [vmem:[%s0 + $0x28] sm:$0xf]
    %v33 = vld [vmem:[%s0 + $0x2c] sm:$0xf]
    %v34 = vld [vmem:[%s0 + $0x30] sm:$0xf]
    %v35 = vld [vmem:[%s0 + $0x34] sm:$0xf]
    %v36 = vld [vmem:[%s0 + $0x38] sm:$0xf]
    %v37 = vld [vmem:[%s0 + $0x3c] sm:$0xf]
    %v38 = vld [vmem:[%s1] sm:$0xf]
    %v39 = vld [vmem:[%s1 + $0x4] sm:$0xf]
    %v40 = vld [vmem:[%s1 + $0x8] sm:$0xf]
    %v41 = vld [vmem:[%s1 + $0xc] sm:$0xf]
    %v42 = vld [vmem:[%s2] sm:$0x1]
    %v44 = vlaneseq
    %v45 = vshrl.u32 %v44, 7
    %v46 = vsub.s32 0, %v45
    %v47 = vrot.slane %v42, %v46
    %v65 = vunpack.c.l.b16 %v22
    %v66 = vunpack.c.l.b16 %v23
    %v67 = vunpack.c.l.b16 %v24
    %v68 = vunpack.c.l.b16 %v25
    %v69 = vunpack.c.l.b16 %v26
    %v70 = vunpack.c.l.b16 %v27
    %v71 = vunpack.c.l.b16 %v28
    %v72 = vunpack.c.l.b16 %v29
    %v73 = vunpack.c.l.b16 %v30
    %v74 = vunpack.c.l.b16 %v31
    %v75 = vunpack.c.l.b16 %v32
    %v76 = vunpack.c.l.b16 %v33
    %v77 = vunpack.c.l.b16 %v34
    %v78 = vunpack.c.l.b16 %v35
    %v79 = vunpack.c.l.b16 %v36
    %v80 = vunpack.c.l.b16 %v37
    %v81 = vpack.c.b16 %v66, %v65
    %v82 = vpack.c.b16 %v68, %v67
    %v83 = vpack.c.b16 %v70, %v69
    %v84 = vpack.c.b16 %v72, %v71
    %v85 = vpack.c.b16 %v74, %v73
    %v86 = vpack.c.b16 %v76, %v75
    %v87 = vpack.c.b16 %v78, %v77
    %v88 = vpack.c.b16 %v80, %v79
    %v93 = vunpack.c.l.b16 %v38
    %v94 = vunpack.c.l.b16 %v39
    %v95 = vunpack.c.l.b16 %v40
    %v96 = vunpack.c.l.b16 %v41
    %v97 = vpack.c.b16 %v94, %v93
    %v98 = vpack.c.b16 %v96, %v95
    %vm101 = vcmask 261120
    %v103 = vsel %vm101, %v81, 0
    %v106 = vsel %vm101, %v82, 0
    %v109 = vsel %vm101, %v83, 0
    %v112 = vsel %vm101, %v84, 0
    %v115 = vsel %vm101, %v85, 0
    %v118 = vsel %vm101, %v86, 0
    %v121 = vsel %vm101, %v87, 0
    %v124 = vsel %vm101, %v88, 0
    %126 = vmatprep.subr.bf16.mxu0 0
    %127 = vmatpush1.bf16.msra.mxu0 0
    %128 = vmatprep.subr.bf16.mxu0 0
    %129 = vmatpush1.bf16.msra.mxu0 0
    %130 = vmatprep.subr.bf16.mxu0 0
    %131 = vmatpush1.bf16.msra.mxu0 0
    %132 = vmatprep.subr.bf16.mxu0 0
    %133 = vmatpush1.bf16.msra.mxu0 0
    %134 = vmatprep.subr.bf16.mxu0 0
    %135 = vmatpush1.bf16.msra.mxu0 0
    %136 = vmatprep.subr.bf16.mxu0 0
    %137 = vmatpush1.bf16.msra.mxu0 0
    %138 = vmatprep.subr.bf16.mxu0 0
    %139 = vmatpush1.bf16.msra.mxu0 %v98
    %140 = vmatprep.subr.bf16.mxu0 0
    %141 = vmatpush1.bf16.msra.mxu0 %v97
    %142 = vmatprep.subr.bf16.mxu0 0
    %143 = vmatpush2.bf16.msra.mxu0 0
    %144 = vmatprep.subr.bf16.mxu0 0
    %145 = vmatpush2.bf16.msra.mxu0 0
    %146 = vmatprep.subr.bf16.mxu0 0
    %147 = vmatpush2.bf16.msra.mxu0 0
    %148 = vmatprep.subr.bf16.mxu0 0
    %149 = vmatpush2.bf16.msra.mxu0 0
    %150 = vmatprep.subr.bf16.mxu0 0
    %151 = vmatpush2.bf16.msra.mxu0 0
    %152 = vmatprep.subr.bf16.mxu0 0
    %153 = vmatpush2.bf16.msra.mxu0 0
    %154 = vmatprep.subr.bf16.mxu0 0
    %155 = vmatpush2.bf16.msra.mxu0 0
    %156 = vmatprep.subr.bf16.mxu0 0
    %157 = vmatpush2.bf16.msra.mxu0 0
    %158 = vmatprep.mubr.bf16.mxu0 0
    %159 = vmatmul.mubr.bf16.gmra.mxu0 %v103
    %v160 = vpop.f32.mrf.mxu0
    %v161 = vadd.f32 %v47, %v160
    %v162 = vpop.f32.mrf.mxu0
    %v163 = vpop.f32.mrf.mxu0
    %v164 = vadd.f32 %v47, %v163
    %v165 = vpop.f32.mrf.mxu0
    %166 = vmatprep.mubr.bf16.mxu0 0
    %167 = vmatmul.mubr.bf16.gmra.mxu0 %v106
    %v168 = vpop.f32.mrf.mxu0
    %v169 = vadd.f32 %v47, %v168
    %v170 = vpop.f32.mrf.mxu0
    %v171 = vpop.f32.mrf.mxu0
    %v172 = vadd.f32 %v47, %v171
    %v173 = vpop.f32.mrf.mxu0
    %174 = vmatprep.mubr.bf16.mxu0 0
    %175 = vmatmul.mubr.bf16.gmra.mxu0 %v109
    %v176 = vpop.f32.mrf.mxu0
    %v177 = vadd.f32 %v47, %v176
    %v178 = vpop.f32.mrf.mxu0
    %v179 = vpop.f32.mrf.mxu0
    %v180 = vadd.f32 %v47, %v179
    %v181 = vpop.f32.mrf.mxu0
    %182 = vmatprep.mubr.bf16.mxu0 0
    %183 = vmatmul.mubr.bf16.gmra.mxu0 %v112
    %v184 = vpop.f32.mrf.mxu0
    %v185 = vadd.f32 %v47, %v184
    %v186 = vpop.f32.mrf.mxu0
    %v187 = vpop.f32.mrf.mxu0
    %v188 = vadd.f32 %v47, %v187
    %v189 = vpop.f32.mrf.mxu0
    %190 = vmatprep.mubr.bf16.mxu0 0
    %191 = vmatmul.mubr.bf16.gmra.mxu0 %v115
    %v192 = vpop.f32.mrf.mxu0
    %v193 = vadd.f32 %v47, %v192
    %v194 = vpop.f32.mrf.mxu0
    %v195 = vpop.f32.mrf.mxu0
    %v196 = vadd.f32 %v47, %v195
    %v197 = vpop.f32.mrf.mxu0
    %198 = vmatprep.mubr.bf16.mxu0 0
    %199 = vmatmul.mubr.bf16.gmra.mxu0 %v118
    %v200 = vpop.f32.mrf.mxu0
    %v201 = vadd.f32 %v47, %v200
    %v202 = vpop.f32.mrf.mxu0
    %v203 = vpop.f32.mrf.mxu0
    %v204 = vadd.f32 %v47, %v203
    %v205 = vpop.f32.mrf.mxu0
    %206 = vmatprep.mubr.bf16.mxu0 0
    %207 = vmatmul.mubr.bf16.gmra.mxu0 %v121
    %v208 = vpop.f32.mrf.mxu0
    %v209 = vadd.f32 %v47, %v208
    %v210 = vpop.f32.mrf.mxu0
    %v211 = vpop.f32.mrf.mxu0
    %v212 = vadd.f32 %v47, %v211
    %v213 = vpop.f32.mrf.mxu0
    %214 = vmatprep.mubr.bf16.mxu0 0
    %215 = vmatmul.mubr.bf16.gmra.mxu0 %v124
    %v216 = vpop.f32.mrf.mxu0
    %v217 = vadd.f32 %v47, %v216
    %v218 = vpop.f32.mrf.mxu0
    %v219 = vpop.f32.mrf.mxu0
    %v220 = vadd.f32 %v47, %v219
    %v221 = vpop.f32.mrf.mxu0
    %222 = vdwg.mxu0
    %v223 = vld [vmem:[%s4] sm:$0xff]
    %v224 = vld [vmem:[%s4 + $0x8] sm:$0xff]
    %v225 = vld [vmem:[%s4 + $0x10] sm:$0xff]
    %v226 = vld [vmem:[%s4 + $0x18] sm:$0xff]
    %v227 = vld [vmem:[%s4 + $0x20] sm:$0xff]
    %v228 = vld [vmem:[%s4 + $0x28] sm:$0xff]
    %v229 = vld [vmem:[%s4 + $0x30] sm:$0xff]
    %v230 = vld [vmem:[%s4 + $0x38] sm:$0xff]
    %v231 = vld [vmem:[%s4 + $0x40] sm:$0xff]
    %v232 = vld [vmem:[%s4 + $0x48] sm:$0xff]
    %v233 = vld [vmem:[%s4 + $0x50] sm:$0xff]
    %v234 = vld [vmem:[%s4 + $0x58] sm:$0xff]
    %v235 = vld [vmem:[%s4 + $0x60] sm:$0xff]
    %v236 = vld [vmem:[%s4 + $0x68] sm:$0xff]
    %v237 = vld [vmem:[%s4 + $0x70] sm:$0xff]
    %v238 = vld [vmem:[%s4 + $0x78] sm:$0xff]
    %v239 = vld [vmem:[%s3] sm:$0xf]
    %v240 = vld [vmem:[%s3 + $0x4] sm:$0xf]
    %v241 = vld [vmem:[%s3 + $0x8] sm:$0xf]
    %v242 = vld [vmem:[%s3 + $0xc] sm:$0xf]
    %v243 = vld [vmem:[%s3 + $0x10] sm:$0xf]
    %v244 = vld [vmem:[%s3 + $0x14] sm:$0xf]
    %v245 = vld [vmem:[%s3 + $0x18] sm:$0xf]
    %v246 = vld [vmem:[%s3 + $0x1c] sm:$0xf]
    %v247 = vld [vmem:[%s3 + $0x20] sm:$0xf]
    %v248 = vld [vmem:[%s3 + $0x24] sm:$0xf]
    %v249 = vld [vmem:[%s3 + $0x28] sm:$0xf]
    %v250 = vld [vmem:[%s3 + $0x2c] sm:$0xf]
    %v251 = vld [vmem:[%s3 + $0x30] sm:$0xf]
    %v252 = vld [vmem:[%s3 + $0x34] sm:$0xf]
    %v253 = vld [vmem:[%s3 + $0x38] sm:$0xf]
    %v254 = vld [vmem:[%s3 + $0x3c] sm:$0xf]
    %256 = vset.pattern.permute.xlu0 0
    %257 = vperm.xlu0 %256, %v223
    %v258 = vpop.permute.xlu0 %257
    %261 = vset.pattern.permute.xlu0 0
    %262 = vperm.xlu0 %261, %v224
    %v263 = vpop.permute.xlu0 %262
    %266 = vset.pattern.permute.xlu0 0
    %267 = vperm.xlu0 %266, %v225
    %v268 = vpop.permute.xlu0 %267
    %271 = vset.pattern.permute.xlu0 0
    %272 = vperm.xlu0 %271, %v226
    %v273 = vpop.permute.xlu0 %272
    %276 = vset.pattern.permute.xlu0 0
    %277 = vperm.xlu0 %276, %v227
    %v278 = vpop.permute.xlu0 %277
    %281 = vset.pattern.permute.xlu0 0
    %282 = vperm.xlu0 %281, %v228
    %v283 = vpop.permute.xlu0 %282
    %286 = vset.pattern.permute.xlu0 0
    %287 = vperm.xlu0 %286, %v229
    %v288 = vpop.permute.xlu0 %287
    %291 = vset.pattern.permute.xlu0 0
    %292 = vperm.xlu0 %291, %v230
    %v293 = vpop.permute.xlu0 %292
    %296 = vset.pattern.permute.xlu0 0
    %297 = vperm.xlu0 %296, %v231
    %v298 = vpop.permute.xlu0 %297
    %301 = vset.pattern.permute.xlu0 0
    %302 = vperm.xlu0 %301, %v232
    %v303 = vpop.permute.xlu0 %302
    %306 = vset.pattern.permute.xlu0 0
    %307 = vperm.xlu0 %306, %v233
    %v308 = vpop.permute.xlu0 %307
    %311 = vset.pattern.permute.xlu0 0
    %312 = vperm.xlu0 %311, %v234
    %v313 = vpop.permute.xlu0 %312
    %316 = vset.pattern.permute.xlu0 0
    %317 = vperm.xlu0 %316, %v235
    %v318 = vpop.permute.xlu0 %317
    %321 = vset.pattern.permute.xlu0 0
    %322 = vperm.xlu0 %321, %v236
    %v323 = vpop.permute.xlu0 %322
    %326 = vset.pattern.permute.xlu0 0
    %327 = vperm.xlu0 %326, %v237
    %v328 = vpop.permute.xlu0 %327
    %331 = vset.pattern.permute.xlu0 0
    %332 = vperm.xlu0 %331, %v238
    %v333 = vpop.permute.xlu0 %332
    %v335 = vmul.f32 %v161, %v258
    %v336 = vmul.f32 %v164, %v263
    %v337 = vmul.f32 %v169, %v268
    %v338 = vmul.f32 %v172, %v273
    %v339 = vmul.f32 %v177, %v278
    %v340 = vmul.f32 %v180, %v283
    %v341 = vmul.f32 %v185, %v288
    %v342 = vmul.f32 %v188, %v293
    %v343 = vmul.f32 %v193, %v298
    %v344 = vmul.f32 %v196, %v303
    %v345 = vmul.f32 %v201, %v308
    %v346 = vmul.f32 %v204, %v313
    %v347 = vmul.f32 %v209, %v318
    %v348 = vmul.f32 %v212, %v323
    %v349 = vmul.f32 %v217, %v328
    %v350 = vmul.f32 %v220, %v333
    %v351 = vpack.c.bf16 %v336, %v335
    %v352 = vpack.c.bf16 %v338, %v337
    %v353 = vpack.c.bf16 %v340, %v339
    %v354 = vpack.c.bf16 %v342, %v341
    %v355 = vpack.c.bf16 %v344, %v343
    %v356 = vpack.c.bf16 %v346, %v345
    %v357 = vpack.c.bf16 %v348, %v347
    %v358 = vpack.c.bf16 %v350, %v349
    %v375 = vunpack.c.l.b16 %v239
    %v376 = vunpack.c.l.b16 %v240
    %v377 = vunpack.c.l.b16 %v241
    %v378 = vunpack.c.l.b16 %v242
    %v379 = vunpack.c.l.b16 %v243
    %v380 = vunpack.c.l.b16 %v244
    %v381 = vunpack.c.l.b16 %v245
    %v382 = vunpack.c.l.b16 %v246
    %v383 = vunpack.c.l.b16 %v247
    %v384 = vunpack.c.l.b16 %v248
    %v385 = vunpack.c.l.b16 %v249
    %v386 = vunpack.c.l.b16 %v250
    %v387 = vunpack.c.l.b16 %v251
    %v388 = vunpack.c.l.b16 %v252
    %v389 = vunpack.c.l.b16 %v253
    %v390 = vunpack.c.l.b16 %v254
    %v391 = vpack.c.b16 %v376, %v375
    %v392 = vpack.c.b16 %v378, %v377
    %v393 = vpack.c.b16 %v380, %v379
    %v394 = vpack.c.b16 %v382, %v381
    %v395 = vpack.c.b16 %v384, %v383
    %v396 = vpack.c.b16 %v386, %v385
    %v397 = vpack.c.b16 %v388, %v387
    %v398 = vpack.c.b16 %v390, %v389
    %407 = vmatprep.subr.bf16.mxu0 0
    %408 = vmatpush1.bf16.msra.mxu0 %v358
    %409 = vmatprep.subr.bf16.mxu0 0
    %410 = vmatpush1.bf16.msra.mxu0 %v357
    %411 = vmatprep.subr.bf16.mxu0 0
    %412 = vmatpush1.bf16.msra.mxu0 %v356
    %413 = vmatprep.subr.bf16.mxu0 0
    %414 = vmatpush1.bf16.msra.mxu0 %v355
    %415 = vmatprep.subr.bf16.mxu0 0
    %416 = vmatpush1.bf16.msra.mxu0 %v354
    %417 = vmatprep.subr.bf16.mxu0 0
    %418 = vmatpush1.bf16.msra.mxu0 %v353
    %419 = vmatprep.subr.bf16.mxu0 0
    %420 = vmatpush1.bf16.msra.mxu0 %v352
    %421 = vmatprep.subr.bf16.mxu0 0
    %422 = vmatpush1.bf16.msra.mxu0 %v351
    %423 = vmatprep.subr.bf16.mxu0 0
    %424 = vmatpush2.bf16.msra.mxu0 0
    %425 = vmatprep.subr.bf16.mxu0 0
    %426 = vmatpush2.bf16.msra.mxu0 0
    %427 = vmatprep.subr.bf16.mxu0 0
    %428 = vmatpush2.bf16.msra.mxu0 0
    %429 = vmatprep.subr.bf16.mxu0 0
    %430 = vmatpush2.bf16.msra.mxu0 0
    %431 = vmatprep.subr.bf16.mxu0 0
    %432 = vmatpush2.bf16.msra.mxu0 0
    %433 = vmatprep.subr.bf16.mxu0 0
    %434 = vmatpush2.bf16.msra.mxu0 0
    %435 = vmatprep.subr.bf16.mxu0 0
    %436 = vmatpush2.bf16.msra.mxu0 0
    %437 = vmatprep.subr.bf16.mxu0 0
    %438 = vmatpush2.bf16.msra.mxu0 0
    %439 = vmatprep.mubr.bf16.mxu0 0
    %440 = vmatmul.mubr.bf16.gmra.mxu0 %v391
    %v441 = vpop.f32.mrf.mxu0
    %v442 = vadd.f32 0.0, %v441
    %v443 = vpop.f32.mrf.mxu0
    %v444 = vpop.f32.mrf.mxu0
    %v445 = vadd.f32 0.0, %v444
    %v446 = vpop.f32.mrf.mxu0
    %447 = vmatprep.mubr.bf16.mxu0 0
    %448 = vmatmul.mubr.bf16.gmra.mxu0 %v392
    %v449 = vpop.f32.mrf.mxu0
    %v450 = vadd.f32 0.0, %v449
    %v451 = vpop.f32.mrf.mxu0
    %v452 = vpop.f32.mrf.mxu0
    %v453 = vadd.f32 0.0, %v452
    %v454 = vpop.f32.mrf.mxu0
    %455 = vmatprep.mubr.bf16.mxu0 0
    %456 = vmatmul.mubr.bf16.gmra.mxu0 %v393
    %v457 = vpop.f32.mrf.mxu0
    %v458 = vadd.f32 0.0, %v457
    %v459 = vpop.f32.mrf.mxu0
    %v460 = vpop.f32.mrf.mxu0
    %v461 = vadd.f32 0.0, %v460
    %v462 = vpop.f32.mrf.mxu0
    %463 = vmatprep.mubr.bf16.mxu0 0
    %464 = vmatmul.mubr.bf16.gmra.mxu0 %v394
    %v465 = vpop.f32.mrf.mxu0
    %v466 = vadd.f32 0.0, %v465
    %v467 = vpop.f32.mrf.mxu0
    %v468 = vpop.f32.mrf.mxu0
    %v469 = vadd.f32 0.0, %v468
    %v470 = vpop.f32.mrf.mxu0
    %471 = vmatprep.mubr.bf16.mxu0 0
    %472 = vmatmul.mubr.bf16.gmra.mxu0 %v395
    %v473 = vpop.f32.mrf.mxu0
    %v474 = vadd.f32 0.0, %v473
    %v475 = vpop.f32.mrf.mxu0
    %v476 = vpop.f32.mrf.mxu0
    %v477 = vadd.f32 0.0, %v476
    %v478 = vpop.f32.mrf.mxu0
    %479 = vmatprep.mubr.bf16.mxu0 0
    %480 = vmatmul.mubr.bf16.gmra.mxu0 %v396
    %v481 = vpop.f32.mrf.mxu0
    %v482 = vadd.f32 0.0, %v481
    %v483 = vpop.f32.mrf.mxu0
    %v484 = vpop.f32.mrf.mxu0
    %v485 = vadd.f32 0.0, %v484
    %v486 = vpop.f32.mrf.mxu0
    %487 = vmatprep.mubr.bf16.mxu0 0
    %488 = vmatmul.mubr.bf16.gmra.mxu0 %v397
    %v489 = vpop.f32.mrf.mxu0
    %v490 = vadd.f32 0.0, %v489
    %v491 = vpop.f32.mrf.mxu0
    %v492 = vpop.f32.mrf.mxu0
    %v493 = vadd.f32 0.0, %v492
    %v494 = vpop.f32.mrf.mxu0
    %495 = vmatprep.mubr.bf16.mxu0 0
    %496 = vmatmul.mubr.bf16.gmra.mxu0 %v398
    %v497 = vpop.f32.mrf.mxu0
    %v498 = vadd.f32 0.0, %v497
    %v499 = vpop.f32.mrf.mxu0
    %v500 = vpop.f32.mrf.mxu0
    %v501 = vadd.f32 0.0, %v500
    %v502 = vpop.f32.mrf.mxu0
    %503 = vdwg.mxu0
    %v504 = vmul.f32 %v442, %v258
    %v505 = vmul.f32 %v445, %v263
    %v506 = vmul.f32 %v450, %v268
    %v507 = vmul.f32 %v453, %v273
    %v508 = vmul.f32 %v458, %v278
    %v509 = vmul.f32 %v461, %v283
    %v510 = vmul.f32 %v466, %v288
    %v511 = vmul.f32 %v469, %v293
    %v512 = vmul.f32 %v474, %v298
    %v513 = vmul.f32 %v477, %v303
    %v514 = vmul.f32 %v482, %v308
    %v515 = vmul.f32 %v485, %v313
    %v516 = vmul.f32 %v490, %v318
    %v517 = vmul.f32 %v493, %v323
    %v518 = vmul.f32 %v498, %v328
    %v519 = vmul.f32 %v501, %v333
    %v520 = vmul.f32 %v504, %v258
    %v521 = vmul.f32 %v505, %v263
    %v522 = vmul.f32 %v506, %v268
    %v523 = vmul.f32 %v507, %v273
    %v524 = vmul.f32 %v508, %v278
    %v525 = vmul.f32 %v509, %v283
    %v526 = vmul.f32 %v510, %v288
    %v527 = vmul.f32 %v511, %v293
    %v528 = vmul.f32 %v512, %v298
    %v529 = vmul.f32 %v513, %v303
    %v530 = vmul.f32 %v514, %v308
    %v531 = vmul.f32 %v515, %v313
    %v532 = vmul.f32 %v516, %v318
    %v533 = vmul.f32 %v517, %v323
    %v534 = vmul.f32 %v518, %v328
    %v535 = vmul.f32 %v519, %v333
    %v536 = vpack.c.bf16 %v521, %v520
    %v537 = vpack.c.bf16 %v523, %v522
    %v538 = vpack.c.bf16 %v525, %v524
    %v539 = vpack.c.bf16 %v527, %v526
    %v540 = vpack.c.bf16 %v529, %v528
    %v541 = vpack.c.bf16 %v531, %v530
    %v542 = vpack.c.bf16 %v533, %v532
    %v543 = vpack.c.bf16 %v535, %v534
    %544 = vmatprep.subr.bf16.mxu0 0
    %545 = vmatpush1.bf16.msra.mxu0 %v543
    %546 = vmatprep.subr.bf16.mxu0 0
    %547 = vmatpush1.bf16.msra.mxu0 %v542
    %548 = vmatprep.subr.bf16.mxu0 0
    %549 = vmatpush1.bf16.msra.mxu0 %v541
    %550 = vmatprep.subr.bf16.mxu0 0
    %551 = vmatpush1.bf16.msra.mxu0 %v540
    %552 = vmatprep.subr.bf16.mxu0 0
    %553 = vmatpush1.bf16.msra.mxu0 %v539
    %554 = vmatprep.subr.bf16.mxu0 0
    %555 = vmatpush1.bf16.msra.mxu0 %v538
    %556 = vmatprep.subr.bf16.mxu0 0
    %557 = vmatpush1.bf16.msra.mxu0 %v537
    %558 = vmatprep.subr.bf16.mxu0 0
    %559 = vmatpush1.bf16.msra.mxu0 %v536
    %560 = vmatprep.subr.bf16.mxu0 0
    %561 = vmatpush2.bf16.msra.mxu0 0
    %562 = vmatprep.subr.bf16.mxu0 0
    %563 = vmatpush2.bf16.msra.mxu0 0
    %564 = vmatprep.subr.bf16.mxu0 0
    %565 = vmatpush2.bf16.msra.mxu0 0
    %566 = vmatprep.subr.bf16.mxu0 0
    %567 = vmatpush2.bf16.msra.mxu0 0
    %568 = vmatprep.subr.bf16.mxu0 0
    %569 = vmatpush2.bf16.msra.mxu0 0
    %570 = vmatprep.subr.bf16.mxu0 0
    %571 = vmatpush2.bf16.msra.mxu0 0
    %572 = vmatprep.subr.bf16.mxu0 0
    %573 = vmatpush2.bf16.msra.mxu0 0
    %574 = vmatprep.subr.bf16.mxu0 0
    %575 = vmatpush2.bf16.msra.mxu0 0
    %576 = vmatprep.mubr.bf16.mxu0 0
    %577 = vmatmul.mubr.bf16.gmra.mxu0 %v391
    %v578 = vpop.f32.mrf.mxu0
    %v579 = vadd.f32 0.0, %v578
    %v580 = vpop.f32.mrf.mxu0
    %v581 = vpop.f32.mrf.mxu0
    %v582 = vadd.f32 0.0, %v581
    %v583 = vpop.f32.mrf.mxu0
    %584 = vmatprep.mubr.bf16.mxu0 0
    %585 = vmatmul.mubr.bf16.gmra.mxu0 %v392
    %v586 = vpop.f32.mrf.mxu0
    %v587 = vadd.f32 0.0, %v586
    %v588 = vpop.f32.mrf.mxu0
    %v589 = vpop.f32.mrf.mxu0
    %v590 = vadd.f32 0.0, %v589
    %v591 = vpop.f32.mrf.mxu0
    %592 = vmatprep.mubr.bf16.mxu0 0
    %593 = vmatmul.mubr.bf16.gmra.mxu0 %v393
    %v594 = vpop.f32.mrf.mxu0
    %v595 = vadd.f32 0.0, %v594
    %v596 = vpop.f32.mrf.mxu0
    %v597 = vpop.f32.mrf.mxu0
    %v598 = vadd.f32 0.0, %v597
    %v599 = vpop.f32.mrf.mxu0
    %600 = vmatprep.mubr.bf16.mxu0 0
    %601 = vmatmul.mubr.bf16.gmra.mxu0 %v394
    %v602 = vpop.f32.mrf.mxu0
    %v603 = vadd.f32 0.0, %v602
    %v604 = vpop.f32.mrf.mxu0
    %v605 = vpop.f32.mrf.mxu0
    %v606 = vadd.f32 0.0, %v605
    %v607 = vpop.f32.mrf.mxu0
    %608 = vmatprep.mubr.bf16.mxu0 0
    %609 = vmatmul.mubr.bf16.gmra.mxu0 %v395
    %v610 = vpop.f32.mrf.mxu0
    %v611 = vadd.f32 0.0, %v610
    %v612 = vpop.f32.mrf.mxu0
    %v613 = vpop.f32.mrf.mxu0
    %v614 = vadd.f32 0.0, %v613
    %v615 = vpop.f32.mrf.mxu0
    %616 = vmatprep.mubr.bf16.mxu0 0
    %617 = vmatmul.mubr.bf16.gmra.mxu0 %v396
    %v618 = vpop.f32.mrf.mxu0
    %v619 = vadd.f32 0.0, %v618
    %v620 = vpop.f32.mrf.mxu0
    %v621 = vpop.f32.mrf.mxu0
    %v622 = vadd.f32 0.0, %v621
    %v623 = vpop.f32.mrf.mxu0
    %624 = vmatprep.mubr.bf16.mxu0 0
    %625 = vmatmul.mubr.bf16.gmra.mxu0 %v397
    %v626 = vpop.f32.mrf.mxu0
    %v627 = vadd.f32 0.0, %v626
    %v628 = vpop.f32.mrf.mxu0
    %v629 = vpop.f32.mrf.mxu0
    %v630 = vadd.f32 0.0, %v629
    %v631 = vpop.f32.mrf.mxu0
    %632 = vmatprep.mubr.bf16.mxu0 0
    %633 = vmatmul.mubr.bf16.gmra.mxu0 %v398
    %v634 = vpop.f32.mrf.mxu0
    %v635 = vadd.f32 0.0, %v634
    %v636 = vpop.f32.mrf.mxu0
    %v637 = vpop.f32.mrf.mxu0
    %v638 = vadd.f32 0.0, %v637
    %v639 = vpop.f32.mrf.mxu0
    %640 = vdwg.mxu0
    %v641 = vmul.f32 %v579, %v258
    %v642 = vmul.f32 %v582, %v263
    %v643 = vmul.f32 %v587, %v268
    %v644 = vmul.f32 %v590, %v273
    %v645 = vmul.f32 %v595, %v278
    %v646 = vmul.f32 %v598, %v283
    %v647 = vmul.f32 %v603, %v288
    %v648 = vmul.f32 %v606, %v293
    %v649 = vmul.f32 %v611, %v298
    %v650 = vmul.f32 %v614, %v303
    %v651 = vmul.f32 %v619, %v308
    %v652 = vmul.f32 %v622, %v313
    %v653 = vmul.f32 %v627, %v318
    %v654 = vmul.f32 %v630, %v323
    %v655 = vmul.f32 %v635, %v328
    %v656 = vmul.f32 %v638, %v333
    %657 = vst [vmem:[#allocation2] sm:$0xff] %v641
    %658 = vst [vmem:[#allocation2 + $0x8] sm:$0xff] %v642
    %659 = vst [vmem:[#allocation2 + $0x10] sm:$0xff] %v643
    %660 = vst [vmem:[#allocation2 + $0x18] sm:$0xff] %v644
    %661 = vst [vmem:[#allocation2 + $0x20] sm:$0xff] %v645
    %662 = vst [vmem:[#allocation2 + $0x28] sm:$0xff] %v646
    %663 = vst [vmem:[#allocation2 + $0x30] sm:$0xff] %v647
    %664 = vst [vmem:[#allocation2 + $0x38] sm:$0xff] %v648
    %665 = vst [vmem:[#allocation2 + $0x40] sm:$0xff] %v649
    %666 = vst [vmem:[#allocation2 + $0x48] sm:$0xff] %v650
    %667 = vst [vmem:[#allocation2 + $0x50] sm:$0xff] %v651
    %668 = vst [vmem:[#allocation2 + $0x58] sm:$0xff] %v652
    %669 = vst [vmem:[#allocation2 + $0x60] sm:$0xff] %v653
    %670 = vst [vmem:[#allocation2 + $0x68] sm:$0xff] %v654
    %671 = vst [vmem:[#allocation2 + $0x70] sm:$0xff] %v655
    %672 = vst [vmem:[#allocation2 + $0x78] sm:$0xff] %v656
    // Predicated region
    $region22: #{tpu_custom_call.1} parent=1 // pred_check
      _
    $region23: #{tpu_custom_call.1} parent=1 // pred_check_branch
      %674 = sbr.rel (0) target = $region25
    $region24: #{tpu_custom_call.1} parent=1 // pred_region
      %s676 = ssub.s32 2048, 2048
      %677 = vsyncadd [#allocation3], %s676
      %s678 = sshll.u32 [#allocation2], 4
      %s679 = int_to_ptr.vmem [resolvable:$true] %s678
      %684 = dma.vmem_to_hbm [thread:$0]  %s679, 2048, %s5, [#allocation3], 128, 128, 8
    $region25: #{tpu_custom_call.1} parent=1 // pred_fallthru
      _
    // Predicated region
    $region26: #{tpu_custom_call.1} parent=1 // pred_check
      _
    $region27: #{tpu_custom_call.1} parent=1 // pred_check_branch
      %686 = sbr.rel (0) target = $region29
    $region28: #{tpu_custom_call.1} parent=1 // pred_region
      %687 = dma.done [#allocation3], 2048
    $region29: #{tpu_custom_call.1} parent=1 // pred_fallthru
      _
    %688 = vsyncpa [#allocation3], 1

</llo_original>
